<compile_context>
chip_gen: v7x
topology: tpu7x:2x2x1
jax: 0.10.0
libtpu: 0.0.40
codegen_flags: <defaults>
</compile_context>

<pallas_src>
import functools

import jax
import jax.numpy as jnp
from jax.experimental import pallas as pl
from jax.experimental.pallas import tpu as pltpu

LANE = 128
SUBLANE = 8


def _round_up(n, m):
    return ((n + m - 1) // m) * m


def _pad2(a, rows, cols):
    return jnp.pad(a, ((0, rows - a.shape[0]), (0, cols - a.shape[1])))


# --------------------------------------------------------------------------
# Kernel body
# --------------------------------------------------------------------------
def _make_encoder_kernel(num_hidden, emb_pad, compute_dtype):
    """`num_hidden` Linear+ReLU layers + fused mu/logvar head + exp(0.5*lv)."""

    def kernel(*refs):
        # refs = x, (W_i, b_i) * num_hidden, W_head, b_head, fused_out
        x_ref = refs[0]
        out_ref = refs[-1]

        # x streamed in f32 (unpadded feature dim); cast on-chip for the MXU.
        h = x_ref[...].astype(compute_dtype)

        idx = 1
        for _ in range(num_hidden):
            w = refs[idx][...]          # compute_dtype, K/N lane-padded
            b = refs[idx + 1][...]      # f32 [1, N]
            idx += 2
            y = jnp.dot(h, w, preferred_element_type=jnp.float32) + b
            h = jnp.maximum(y, 0.0).astype(compute_dtype)   # ReLU -> MXU dtype

        w_head = refs[idx][...]         # [feat, 2*emb_pad], compute_dtype
        b_head = refs[idx + 1][...]     # [1, 2*emb_pad], f32

        head = jnp.dot(h, w_head, preferred_element_type=jnp.float32) + b_head
        mu = head[:, :emb_pad]
        logvar = head[:, emb_pad:]

        # Fused output slab: [ mu | std | logvar ], 128-aligned boundaries,
        # single lane-dense output DMA per grid step.
        out_ref[:, :emb_pad] = mu
        out_ref[:, emb_pad:2 * emb_pad] = jnp.exp(0.5 * logvar)
        out_ref[:, 2 * emb_pad:] = logvar

    return kernel


# --------------------------------------------------------------------------
# One-time parameter preparation (hoisted out of the per-call path)
# --------------------------------------------------------------------------
def prepare_encoder_params(hidden_params, mu_params, lv_params,
                           compute_dtype=jnp.bfloat16):
    """Pad weights to lane multiples, fuse the mu/logvar head, cast for MXU.

    hidden_params : list of (W [in,out], b [1,out]) for the compress layers
    mu_params     : (W [dim, emb], b [1, emb])
    lv_params     : (W [dim, emb], b [1, emb])
    Returns (hidden_prep, head_prep, emb, emb_pad).
    """
    if hidden_params:
        data_dim = hidden_params[0][0].shape[0]
    else:
        data_dim = mu_params[0].shape[0]
    dims = [data_dim] + [w.shape[1] for w, _ in hidden_params]
    emb = mu_params[0].shape[1]
    emb_pad = _round_up(emb, LANE)

    hidden_prep = []
    for li, (w, b) in enumerate(hidden_params):
        # Layer 0's K matches the UNPADDED x feature dim; later layers' K
        # matches the lane-padded width of the previous activation.
        k = dims[li] if li == 0 else _round_up(dims[li], LANE)
        n = _round_up(dims[li + 1], LANE)
        hidden_prep.append((
            _pad2(w, k, n).astype(compute_dtype),
            _pad2(b, 1, n).astype(jnp.float32),
        ))

    feat = _round_up(dims[-1], LANE) if hidden_params else data_dim
    w_head = jnp.concatenate(
        [_pad2(mu_params[0], feat, emb_pad),
         _pad2(lv_params[0], feat, emb_pad)], axis=1).astype(compute_dtype)
    b_head = jnp.concatenate(
        [_pad2(mu_params[1], 1, emb_pad),
         _pad2(lv_params[1], 1, emb_pad)], axis=1).astype(jnp.float32)

    return tuple(hidden_prep), (w_head, b_head), emb, emb_pad


# --------------------------------------------------------------------------
# Batch-tile selection (adaptive, v7x-friendly)
# --------------------------------------------------------------------------
def _choose_tiles(batch, tile_b_max):
    num_tiles = max(1, pl.cdiv(batch, tile_b_max))
    if num_tiles > 1 and num_tiles % 2:
        # Even grid length so both v7x TensorCores get work.
        num_tiles += 1
    elif num_tiles == 1 and batch >= 2 * 256:
        # Split in two only if each tile still has M >= 256 (fills the
        # 256-wide MXU on v6e/v7x) -- otherwise keep a single big tile.
        num_tiles = 2
    tile_b = max(SUBLANE, _round_up(pl.cdiv(batch, num_tiles), SUBLANE))
    return tile_b, num_tiles


# --------------------------------------------------------------------------
# Forward pass
# --------------------------------------------------------------------------
@functools.partial(jax.jit,
                   static_argnames=("emb", "emb_pad", "tile_b_max",
                                    "return_padded"))
def encoder_forward(x, hidden_prep, head_prep, *, emb, emb_pad,
                    tile_b_max=512, return_padded=False):
    """Encoder forward pass in one batch-tiled Pallas call.

    x           : [B, dataDim] float32 (unpadded)
    hidden_prep : tuple of (W_pad, b_pad) from prepare_encoder_params
    head_prep   : (W_head, b_head) fused mu/logvar head
    Returns (mu, std, logvar), each [B, emb] float32, unless
    return_padded=True in which case the fused padded slab
    [B_pad, 3*emb_pad] (layout [mu | std | logvar]) is returned, letting
    callers in a hot loop skip the extra slice passes.
    """
    batch, data_dim = x.shape
    num_hidden = len(hidden_prep)
    w_head, b_head = head_prep
    compute_dtype = w_head.dtype

    tile_b, num_tiles = _choose_tiles(batch, tile_b_max)
    b_total = tile_b * num_tiles
    x_in = x if b_total == batch else jnp.pad(x, ((0, b_total - batch), (0, 0)))

    # ---- inputs / BlockSpecs ----------------------------------------------
    flat_inputs = [x_in]
    # x block: last dim equals the full (unpadded) array dim -> no HBM padding.
    in_specs = [pl.BlockSpec((tile_b, data_dim), lambda i: (i, 0))]

    for w, b in hidden_prep:
        flat_inputs += [w, b]
        in_specs += [
            pl.BlockSpec(w.shape, lambda i: (0, 0)),   # VMEM-resident weight
            pl.BlockSpec(b.shape, lambda i: (0, 0)),
        ]
    flat_inputs += [w_head, b_head]
    in_specs += [
        pl.BlockSpec(w_head.shape, lambda i: (0, 0)),
        pl.BlockSpec(b_head.shape, lambda i: (0, 0)),
    ]

    out_width = 3 * emb_pad   # [ mu | std | logvar ]
    out_shape = jax.ShapeDtypeStruct((b_total, out_width), jnp.float32)
    out_specs = pl.BlockSpec((tile_b, out_width), lambda i: (i, 0))

    # ---- advisory cost estimate --------------------------------------------
    flops = 0
    for w, _ in hidden_prep:
        flops += 2 * b_total * w.shape[0] * w.shape[1]
    flops += 2 * b_total * w_head.shape[0] * w_head.shape[1]
    bytes_accessed = sum(int(a.size) * a.dtype.itemsize for a in flat_inputs)
    bytes_accessed += b_total * out_width * 4
    cost = pl.CostEstimate(
        flops=int(flops),
        transcendentals=int(b_total * emb_pad),
        bytes_accessed=int(bytes_accessed),
    )

    fused = pl.pallas_call(
        _make_encoder_kernel(num_hidden, emb_pad, compute_dtype),
        out_shape=out_shape,
        grid=(num_tiles,),
        in_specs=in_specs,
        out_specs=out_specs,
        compiler_params=pltpu.CompilerParams(
            dimension_semantics=("parallel",),
            vmem_limit_bytes=32 * 1024 * 1024,
        ),
        cost_estimate=cost,
    )(*flat_inputs)

    if return_padded:
        return fused

    mu = fused[:batch, :emb]
    std = fused[:batch, emb_pad:emb_pad + emb]
    logvar = fused[:batch, 2 * emb_pad:2 * emb_pad + emb]
    return mu, std, logvar


# --------------------------------------------------------------------------
# Deterministic init + pure-JAX reference
# --------------------------------------------------------------------------
def init_encoder_params(key, data_dim, compress_dims, embedding_dim):
    """Deterministic parameter init matching the PyTorch module's shapes."""
    hidden_params = []
    dim = data_dim
    for out_dim in compress_dims:
        key, kw, kb = jax.random.split(key, 3)
        bound = 1.0 / jnp.sqrt(dim)
        w = jax.random.uniform(kw, (dim, out_dim), jnp.float32, -bound, bound)
        b = jax.random.uniform(kb, (1, out_dim), jnp.float32, -bound, bound)
        hidden_params.append((w, b))
        dim = out_dim

    bound = 1.0 / jnp.sqrt(dim)
    key, k1w, k1b, k2w, k2b = jax.random.split(key, 5)
    mu_params = (
        jax.random.uniform(k1w, (dim, embedding_dim), jnp.float32, -bound, bound),
        jax.random.uniform(k1b, (1, embedding_dim), jnp.float32, -bound, bound),
    )
    lv_params = (
        jax.random.uniform(k2w, (dim, embedding_dim), jnp.float32, -bound, bound),
        jax.random.uniform(k2b, (1, embedding_dim), jnp.float32, -bound, bound),
    )
    return hidden_params, mu_params, lv_params


def reference_forward(x, hidden_params, mu_params, lv_params,
                      compute_dtype=jnp.float32):
    """Pure-JAX reference; compute_dtype mimics the kernel's MXU input dtype."""
    h = x.astype(compute_dtype)
    for w, b in hidden_params:
        y = jnp.dot(h, w.astype(compute_dtype),
                    preferred_element_type=jnp.float32) + b
        h = jnp.maximum(y, 0.0).astype(compute_dtype)
    mu = jnp.dot(h, mu_params[0].astype(compute_dtype),
                 preferred_element_type=jnp.float32) + mu_params[1]
    logvar = jnp.dot(h, lv_params[0].astype(compute_dtype),
                     preferred_element_type=jnp.float32) + lv_params[1]
    return mu, jnp.exp(0.5 * logvar), logvar


if __name__ == "__main__":
    batch = 256
    data_dim = 32
    compress_dims = (64, 32)
    embedding_dim = 16

    key = jax.random.PRNGKey(0)
    key, kx = jax.random.split(key)
    x = jax.random.normal(kx, (batch, data_dim), jnp.float32)

    hidden_params, mu_params, lv_params = init_encoder_params(
        key, data_dim, compress_dims, embedding_dim)

    # One-time, out of the hot path.
    hidden_prep, head_prep, emb, emb_pad = prepare_encoder_params(
        hidden_params, mu_params, lv_params, compute_dtype=jnp.bfloat16)

    mu, std, logvar = encoder_forward(
        x, hidden_prep, head_prep, emb=emb, emb_pad=emb_pad, tile_b_max=512)
    jax.block_until_ready((mu, std, logvar))

    # Check 1: against a reference using the same bf16 matmul inputs (tight).
    mu_b, std_b, lv_b = reference_forward(
        x, hidden_params, mu_params, lv_params, compute_dtype=jnp.bfloat16)
    assert jnp.allclose(mu, mu_b, atol=2e-3, rtol=2e-3)
    assert jnp.allclose(std, std_b, atol=2e-3, rtol=2e-3)
    assert jnp.allclose(logvar, lv_b, atol=2e-3, rtol=2e-3)

    # Check 2: against the pure-f32 reference (loose; bf16 MXU inputs).
    mu_r, std_r, lv_r = reference_forward(x, hidden_params, mu_params, lv_params)
    assert jnp.allclose(mu, mu_r, atol=5e-2, rtol=5e-2)
    assert jnp.allclose(std, std_r, atol=5e-2, rtol=5e-2)
    assert jnp.allclose(logvar, lv_r, atol=5e-2, rtol=5e-2)

    print("KERNEL_OK")
</pallas_src>

<mosaic_0001>
module attributes {stable_mosaic.version = 11 : i64} {
  func.func @kernel(%arg0: i32, %arg1: memref<256x32xf32, #tpu.memory_space<vmem>>, %arg2: memref<32x128xbf16, #tpu.memory_space<vmem>>, %arg3: memref<1x128xf32, #tpu.memory_space<vmem>>, %arg4: memref<128x128xbf16, #tpu.memory_space<vmem>>, %arg5: memref<1x128xf32, #tpu.memory_space<vmem>>, %arg6: memref<128x256xbf16, #tpu.memory_space<vmem>>, %arg7: memref<1x256xf32, #tpu.memory_space<vmem>>, %arg8: memref<256x384xf32, #tpu.memory_space<vmem>>) attributes {dimension_semantics = [#tpu.dimension_semantics<parallel>], iteration_bounds = array<i64: 1>, scalar_prefetch = 0 : i64, scratch_operands = 0 : i64, tpu.core_type = #tpu.core_type<tc>, window_params = [{transform_indices = @transform_0, window_bounds = array<i64: 256, 32>}, {pipeline_mode = #tpu.pipeline_mode<synchronous>, transform_indices = @transform_1, window_bounds = array<i64: 32, 128>}, {pipeline_mode = #tpu.pipeline_mode<synchronous>, transform_indices = @transform_2, window_bounds = array<i64: 1, 128>}, {pipeline_mode = #tpu.pipeline_mode<synchronous>, transform_indices = @transform_3, window_bounds = array<i64: 128, 128>}, {pipeline_mode = #tpu.pipeline_mode<synchronous>, transform_indices = @transform_4, window_bounds = array<i64: 1, 128>}, {pipeline_mode = #tpu.pipeline_mode<synchronous>, transform_indices = @transform_5, window_bounds = array<i64: 128, 256>}, {pipeline_mode = #tpu.pipeline_mode<synchronous>, transform_indices = @transform_6, window_bounds = array<i64: 1, 256>}, {transform_indices = @transform_7, window_bounds = array<i64: 256, 384>}]} {
    %c0 = arith.constant 0 : index
    %c0_0 = arith.constant 0 : index
    %0 = vector.load %arg1[%c0, %c0_0] : memref<256x32xf32, #tpu.memory_space<vmem>>, vector<256x32xf32>
    %1 = arith.truncf %0 : vector<256x32xf32> to vector<256x32xbf16>
    %c0_1 = arith.constant 0 : index
    %c0_2 = arith.constant 0 : index
    %2 = vector.load %arg2[%c0_1, %c0_2] : memref<32x128xbf16, #tpu.memory_space<vmem>>, vector<32x128xbf16>
    %c0_3 = arith.constant 0 : index
    %c0_4 = arith.constant 0 : index
    %3 = vector.load %arg3[%c0_3, %c0_4] : memref<1x128xf32, #tpu.memory_space<vmem>>, vector<1x128xf32>
    %cst = arith.constant dense<0.000000e+00> : vector<256x128xf32>
    %4 = tpu.matmul %1, %2, %cst {dimension_numbers = #tpu.dot_dimension_numbers<[1], [0], [0], [1], [0, 0, 1, 1], [], []>} : vector<256x32xbf16>, vector<32x128xbf16>, vector<256x128xf32> -> vector<256x128xf32>
    %5 = vector.broadcast %3 : vector<1x128xf32> to vector<256x128xf32>
    %6 = arith.addf %4, %5 : vector<256x128xf32>
    %cst_5 = arith.constant 0.000000e+00 : f32
    %7 = vector.broadcast %cst_5 : f32 to vector<256x128xf32>
    %8 = arith.maximumf %6, %7 : vector<256x128xf32>
    %9 = arith.truncf %8 : vector<256x128xf32> to vector<256x128xbf16>
    %c0_6 = arith.constant 0 : index
    %c0_7 = arith.constant 0 : index
    %10 = vector.load %arg4[%c0_6, %c0_7] : memref<128x128xbf16, #tpu.memory_space<vmem>>, vector<128x128xbf16>
    %c0_8 = arith.constant 0 : index
    %c0_9 = arith.constant 0 : index
    %11 = vector.load %arg5[%c0_8, %c0_9] : memref<1x128xf32, #tpu.memory_space<vmem>>, vector<1x128xf32>
    %cst_10 = arith.constant dense<0.000000e+00> : vector<256x128xf32>
    %12 = tpu.matmul %9, %10, %cst_10 {dimension_numbers = #tpu.dot_dimension_numbers<[1], [0], [0], [1], [0, 0, 1, 1], [], []>} : vector<256x128xbf16>, vector<128x128xbf16>, vector<256x128xf32> -> vector<256x128xf32>
    %13 = vector.broadcast %11 : vector<1x128xf32> to vector<256x128xf32>
    %14 = arith.addf %12, %13 : vector<256x128xf32>
    %cst_11 = arith.constant 0.000000e+00 : f32
    %15 = vector.broadcast %cst_11 : f32 to vector<256x128xf32>
    %16 = arith.maximumf %14, %15 : vector<256x128xf32>
    %17 = arith.truncf %16 : vector<256x128xf32> to vector<256x128xbf16>
    %c0_12 = arith.constant 0 : index
    %c0_13 = arith.constant 0 : index
    %18 = vector.load %arg6[%c0_12, %c0_13] : memref<128x256xbf16, #tpu.memory_space<vmem>>, vector<128x256xbf16>
    %c0_14 = arith.constant 0 : index
    %c0_15 = arith.constant 0 : index
    %19 = vector.load %arg7[%c0_14, %c0_15] : memref<1x256xf32, #tpu.memory_space<vmem>>, vector<1x256xf32>
    %cst_16 = arith.constant dense<0.000000e+00> : vector<256x256xf32>
    %20 = tpu.matmul %17, %18, %cst_16 {dimension_numbers = #tpu.dot_dimension_numbers<[1], [0], [0], [1], [0, 0, 1, 1], [], []>} : vector<256x128xbf16>, vector<128x256xbf16>, vector<256x256xf32> -> vector<256x256xf32>
    %21 = vector.broadcast %19 : vector<1x256xf32> to vector<256x256xf32>
    %22 = arith.addf %20, %21 : vector<256x256xf32>
    %23 = vector.extract_strided_slice %22 {offsets = [0, 0], sizes = [256, 128], strides = [1, 1]} : vector<256x256xf32> to vector<256x128xf32>
    %24 = vector.extract_strided_slice %22 {offsets = [0, 128], sizes = [256, 128], strides = [1, 1]} : vector<256x256xf32> to vector<256x128xf32>
    %c0_17 = arith.constant 0 : index
    %c0_18 = arith.constant 0 : index
    %25 = vector.load %arg8[%c0_17, %c0_18] : memref<256x384xf32, #tpu.memory_space<vmem>>, vector<256x128xf32>
    tpu.vector_store %arg8[%c0_17, %c0_18], %23 {strides = array<i32>} : memref<256x384xf32, #tpu.memory_space<vmem>>, vector<256x128xf32>,
    %cst_19 = arith.constant 5.000000e-01 : f32
    %26 = vector.broadcast %cst_19 : f32 to vector<256x128xf32>
    %27 = arith.mulf %26, %24 : vector<256x128xf32>
    %28 = math.exp %27 : vector<256x128xf32>
    %c0_20 = arith.constant 0 : index
    %c128 = arith.constant 128 : index
    %29 = vector.load %arg8[%c0_20, %c128] : memref<256x384xf32, #tpu.memory_space<vmem>>, vector<256x128xf32>
    tpu.vector_store %arg8[%c0_20, %c128], %28 {strides = array<i32>} : memref<256x384xf32, #tpu.memory_space<vmem>>, vector<256x128xf32>,
    %c0_21 = arith.constant 0 : index
    %c256 = arith.constant 256 : index
    %30 = vector.load %arg8[%c0_21, %c256] : memref<256x384xf32, #tpu.memory_space<vmem>>, vector<256x128xf32>
    tpu.vector_store %arg8[%c0_21, %c256], %24 {strides = array<i32>} : memref<256x384xf32, #tpu.memory_space<vmem>>, vector<256x128xf32>,
    return
  }
  func.func @transform_0(%arg0: i32) -> (i32, i32) {
    %c0_i32 = arith.constant 0 : i32
    %c0_i32_0 = arith.constant 0 : i32
    return %arg0, %c0_i32 : i32, i32
  }
  func.func @transform_1(%arg0: i32) -> (i32, i32) {
    %c0_i32 = arith.constant 0 : i32
    %c0_i32_0 = arith.constant 0 : i32
    %c0_i32_1 = arith.constant 0 : i32
    return %c0_i32, %c0_i32_0 : i32, i32
  }
  func.func @transform_2(%arg0: i32) -> (i32, i32) {
    %c0_i32 = arith.constant 0 : i32
    %c0_i32_0 = arith.constant 0 : i32
    %c0_i32_1 = arith.constant 0 : i32
    return %c0_i32, %c0_i32_0 : i32, i32
  }
  func.func @transform_3(%arg0: i32) -> (i32, i32) {
    %c0_i32 = arith.constant 0 : i32
    %c0_i32_0 = arith.constant 0 : i32
    %c0_i32_1 = arith.constant 0 : i32
    return %c0_i32, %c0_i32_0 : i32, i32
  }
  func.func @transform_4(%arg0: i32) -> (i32, i32) {
    %c0_i32 = arith.constant 0 : i32
    %c0_i32_0 = arith.constant 0 : i32
    %c0_i32_1 = arith.constant 0 : i32
    return %c0_i32, %c0_i32_0 : i32, i32
  }
  func.func @transform_5(%arg0: i32) -> (i32, i32) {
    %c0_i32 = arith.constant 0 : i32
    %c0_i32_0 = arith.constant 0 : i32
    %c0_i32_1 = arith.constant 0 : i32
    return %c0_i32, %c0_i32_0 : i32, i32
  }
  func.func @transform_6(%arg0: i32) -> (i32, i32) {
    %c0_i32 = arith.constant 0 : i32
    %c0_i32_0 = arith.constant 0 : i32
    %c0_i32_1 = arith.constant 0 : i32
    return %c0_i32, %c0_i32_0 : i32, i32
  }
  func.func @transform_7(%arg0: i32) -> (i32, i32) {
    %c0_i32 = arith.constant 0 : i32
    %c0_i32_0 = arith.constant 0 : i32
    return %arg0, %c0_i32 : i32, i32
  }
}

</mosaic_0001>

<llo_original>
// kernel: encoder_forward.1
$region0: #{encoder_forward.1}
  #allocation0 [shape = 'u32[]', space=smem, size = 0x4, offset = 0x4, fixed_abs, tag = 'smem constant byte address 0x4 - core index']
  #allocation1 [shape = 'u32[144,128]{1,0:T(1,128)}', space=vmem, size = 0x12000, scoped, tag = 'internal scratch']
  %s0 = inlined_call_operand.vmem [shape: f32[256,32], index: 0, kind: input, shape index: {}]
  %s1 = inlined_call_operand.vmem [shape: bf16[32,128], index: 1, kind: input, shape index: {}]
  %s2 = inlined_call_operand.vmem [shape: f32[1,128], index: 2, kind: input, shape index: {}]
  %s3 = inlined_call_operand.vmem [shape: bf16[128,128], index: 3, kind: input, shape index: {}]
  %s4 = inlined_call_operand.vmem [shape: f32[1,128], index: 4, kind: input, shape index: {}]
  %s5 = inlined_call_operand.vmem [shape: bf16[128,256], index: 5, kind: input, shape index: {}]
  %s6 = inlined_call_operand.vmem [shape: f32[1,256], index: 6, kind: input, shape index: {}]
  %s7 = inlined_call_operand.vmem [shape: f32[256,384], index: 7, kind: output, shape index: {}]
  %s8 = sld [smem:[#allocation0]]
  $region38: #{encoder_forward.1} parent=0
    _
  %s10 = ssub.s32 1, %s8
  %s11 = scalar_select 0, %s10, %s8
  // Predicated region
  $region2: #{encoder_forward.1} parent=0 // pred_check
    _
  $region3: #{encoder_forward.1} parent=0 // pred_check_branch
    %13 = sbr.rel (0) target = $region5
  $region4: #{encoder_forward.1} parent=0 // pred_region
    _
  $region5: #{encoder_forward.1} parent=0 // pred_fallthru
    _
  // Predicated region
  $region6: #{encoder_forward.1} parent=0 // pred_check
    _
  $region7: #{encoder_forward.1} parent=0 // pred_check_branch
    %15 = sbr.rel (0) target = $region9
  $region8: #{encoder_forward.1} parent=0 // pred_region
    _
  $region9: #{encoder_forward.1} parent=0 // pred_fallthru
    _
  // Predicated region
  $region10: #{encoder_forward.1} parent=0 // pred_check
    _
  $region11: #{encoder_forward.1} parent=0 // pred_check_branch
    %17 = sbr.rel (0) target = $region13
  $region12: #{encoder_forward.1} parent=0 // pred_region
    _
  $region13: #{encoder_forward.1} parent=0 // pred_fallthru
    _
  // Predicated region
  $region14: #{encoder_forward.1} parent=0 // pred_check
    _
  $region15: #{encoder_forward.1} parent=0 // pred_check_branch
    %19 = sbr.rel (0) target = $region17
  $region16: #{encoder_forward.1} parent=0 // pred_region
    _
  $region17: #{encoder_forward.1} parent=0 // pred_fallthru
    _
  // Predicated region
  $region18: #{encoder_forward.1} parent=0 // pred_check
    _
  $region19: #{encoder_forward.1} parent=0 // pred_check_branch
    %21 = sbr.rel (0) target = $region21
  $region20: #{encoder_forward.1} parent=0 // pred_region
    _
  $region21: #{encoder_forward.1} parent=0 // pred_fallthru
    _
  // Predicated region
  $region22: #{encoder_forward.1} parent=0 // pred_check
    _
  $region23: #{encoder_forward.1} parent=0 // pred_check_branch
    %23 = sbr.rel (0) target = $region25
  $region24: #{encoder_forward.1} parent=0 // pred_region
    _
  $region25: #{encoder_forward.1} parent=0 // pred_fallthru
    _
  // Predicated region
  $region26: #{encoder_forward.1} parent=0 // pred_check
    _
  $region27: #{encoder_forward.1} parent=0 // pred_check_branch
    %25 = sbr.rel (0) target = $region29
  $region28: #{encoder_forward.1} parent=0 // pred_region
    _
  $region29: #{encoder_forward.1} parent=0 // pred_fallthru
    _
  %v27 = vld [vmem:[%s0] sm:$0xff]
  %v28 = vld [vmem:[%s0 + $0x8] sm:$0xff]
  %v29 = vld [vmem:[%s0 + $0x10] sm:$0xff]
  %v30 = vld [vmem:[%s0 + $0x18] sm:$0xff]
  %v31 = vld [vmem:[%s0 + $0x20] sm:$0xff]
  %v32 = vld [vmem:[%s0 + $0x28] sm:$0xff]
  %v33 = vld [vmem:[%s0 + $0x30] sm:$0xff]
  %v34 = vld [vmem:[%s0 + $0x38] sm:$0xff]
  %v35 = vld [vmem:[%s0 + $0x40] sm:$0xff]
  %v36 = vld [vmem:[%s0 + $0x48] sm:$0xff]
  %v37 = vld [vmem:[%s0 + $0x50] sm:$0xff]
  %v38 = vld [vmem:[%s0 + $0x58] sm:$0xff]
  %v39 = vld [vmem:[%s0 + $0x60] sm:$0xff]
  %v40 = vld [vmem:[%s0 + $0x68] sm:$0xff]
  %v41 = vld [vmem:[%s0 + $0x70] sm:$0xff]
  %v42 = vld [vmem:[%s0 + $0x78] sm:$0xff]
  %v43 = vld [vmem:[%s0 + $0x80] sm:$0xff]
  %v44 = vld [vmem:[%s0 + $0x88] sm:$0xff]
  %v45 = vld [vmem:[%s0 + $0x90] sm:$0xff]
  %v46 = vld [vmem:[%s0 + $0x98] sm:$0xff]
  %v47 = vld [vmem:[%s0 + $0xa0] sm:$0xff]
  %v48 = vld [vmem:[%s0 + $0xa8] sm:$0xff]
  %v49 = vld [vmem:[%s0 + $0xb0] sm:$0xff]
  %v50 = vld [vmem:[%s0 + $0xb8] sm:$0xff]
  %v51 = vld [vmem:[%s0 + $0xc0] sm:$0xff]
  %v52 = vld [vmem:[%s0 + $0xc8] sm:$0xff]
  %v53 = vld [vmem:[%s0 + $0xd0] sm:$0xff]
  %v54 = vld [vmem:[%s0 + $0xd8] sm:$0xff]
  %v55 = vld [vmem:[%s0 + $0xe0] sm:$0xff]
  %v56 = vld [vmem:[%s0 + $0xe8] sm:$0xff]
  %v57 = vld [vmem:[%s0 + $0xf0] sm:$0xff]
  %v58 = vld [vmem:[%s0 + $0xf8] sm:$0xff]
  %v59 = vpack.c.bf16 %v28, %v27
  %v60 = vpack.c.bf16 %v30, %v29
  %v61 = vpack.c.bf16 %v32, %v31
  %v62 = vpack.c.bf16 %v34, %v33
  %v63 = vpack.c.bf16 %v36, %v35
  %v64 = vpack.c.bf16 %v38, %v37
  %v65 = vpack.c.bf16 %v40, %v39
  %v66 = vpack.c.bf16 %v42, %v41
  %v67 = vpack.c.bf16 %v44, %v43
  %v68 = vpack.c.bf16 %v46, %v45
  %v69 = vpack.c.bf16 %v48, %v47
  %v70 = vpack.c.bf16 %v50, %v49
  %v71 = vpack.c.bf16 %v52, %v51
  %v72 = vpack.c.bf16 %v54, %v53
  %v73 = vpack.c.bf16 %v56, %v55
  %v74 = vpack.c.bf16 %v58, %v57
  %v75 = vld [vmem:[%s1] sm:$0xf]
  %v76 = vld [vmem:[%s1 + $0x4] sm:$0xf]
  %v77 = vld [vmem:[%s1 + $0x8] sm:$0xf]
  %v78 = vld [vmem:[%s1 + $0xc] sm:$0xf]
  %v79 = vld [vmem:[%s2] sm:$0x1]
  %v81 = vlaneseq
  %v82 = vshrl.u32 %v81, 7
  %v83 = vsub.s32 0, %v82
  %v84 = vrot.slane %v79, %v83
  %v90 = vunpack.c.l.b16 %v75
  %v91 = vunpack.c.l.b16 %v76
  %v92 = vunpack.c.l.b16 %v77
  %v93 = vunpack.c.l.b16 %v78
  %v94 = vpack.c.b16 %v91, %v90
  %v95 = vpack.c.b16 %v93, %v92
  %vm98 = vcmask 261120
  %v100 = vsel %vm98, %v59, 0
  %v103 = vsel %vm98, %v60, 0
  %v106 = vsel %vm98, %v61, 0
  %v109 = vsel %vm98, %v62, 0
  %v112 = vsel %vm98, %v63, 0
  %v115 = vsel %vm98, %v64, 0
  %v118 = vsel %vm98, %v65, 0
  %v121 = vsel %vm98, %v66, 0
  %v124 = vsel %vm98, %v67, 0
  %v127 = vsel %vm98, %v68, 0
  %v130 = vsel %vm98, %v69, 0
  %v133 = vsel %vm98, %v70, 0
  %v136 = vsel %vm98, %v71, 0
  %v139 = vsel %vm98, %v72, 0
  %v142 = vsel %vm98, %v73, 0
  %v145 = vsel %vm98, %v74, 0
  %147 = vmatprep.subr.bf16.mxu0 0
  %148 = vmatpush1.bf16.msra.mxu0 %v94
  %149 = vmatprep.subr.bf16.mxu0 0
  %150 = vmatpush1.bf16.msra.mxu0 %v95
  %151 = vmatprep.subr.bf16.mxu0 0
  %152 = vmatpush1.bf16.msra.mxu0 0
  %153 = vmatprep.subr.bf16.mxu0 0
  %154 = vmatpush1.bf16.msra.mxu0 0
  %155 = vmatprep.subr.bf16.mxu0 0
  %156 = vmatpush1.bf16.msra.mxu0 0
  %157 = vmatprep.subr.bf16.mxu0 0
  %158 = vmatpush1.bf16.msra.mxu0 0
  %159 = vmatprep.subr.bf16.mxu0 0
  %160 = vmatpush1.bf16.msra.mxu0 0
  %161 = vmatprep.subr.bf16.mxu0 0
  %162 = vmatpush1.bf16.msra.mxu0 0
  %163 = vmatprep.subr.bf16.mxu0 0
  %164 = vmatpush1.bf16.msra.mxu0 0
  %165 = vmatprep.subr.bf16.mxu0 0
  %166 = vmatpush1.bf16.msra.mxu0 0
  %167 = vmatprep.subr.bf16.mxu0 0
  %168 = vmatpush1.bf16.msra.mxu0 0
  %169 = vmatprep.subr.bf16.mxu0 0
  %170 = vmatpush1.bf16.msra.mxu0 0
  %171 = vmatprep.subr.bf16.mxu0 0
  %172 = vmatpush1.bf16.msra.mxu0 0
  %173 = vmatprep.subr.bf16.mxu0 0
  %174 = vmatpush1.bf16.msra.mxu0 0
  %175 = vmatprep.subr.bf16.mxu0 0
  %176 = vmatpush1.bf16.msra.mxu0 0
  %177 = vmatprep.subr.bf16.mxu0 0
  %178 = vmatpush1.bf16.msra.mxu0 0
  %179 = vmatprep.mubr.bf16.mxu0 0
  %180 = vmatmul.mubr.bf16.gmra.mrb[0].mxu0 %v100
  %v181 = vpop.f32.mrb[0].mxu0
  %v182 = vadd.f32 %v84, %v181
  %v183 = vpop.f32.mrb[0].mxu0
  %v184 = vpop.f32.mrb[0].mxu0
  %v185 = vadd.f32 %v84, %v184
  %v186 = vpop.f32.mrb[0].mxu0
  %187 = vmatprep.mubr.bf16.mxu0 0
  %188 = vmatmul.mubr.bf16.gmra.mrb[0].mxu0 %v103
  %v189 = vpop.f32.mrb[0].mxu0
  %v190 = vadd.f32 %v84, %v189
  %v191 = vpop.f32.mrb[0].mxu0
  %v192 = vpop.f32.mrb[0].mxu0
  %v193 = vadd.f32 %v84, %v192
  %v194 = vpop.f32.mrb[0].mxu0
  %195 = vmatprep.mubr.bf16.mxu0 0
  %196 = vmatmul.mubr.bf16.gmra.mrb[0].mxu0 %v106
  %v197 = vpop.f32.mrb[0].mxu0
  %v198 = vadd.f32 %v84, %v197
  %v199 = vpop.f32.mrb[0].mxu0
  %v200 = vpop.f32.mrb[0].mxu0
  %v201 = vadd.f32 %v84, %v200
  %v202 = vpop.f32.mrb[0].mxu0
  %203 = vmatprep.mubr.bf16.mxu0 0
  %204 = vmatmul.mubr.bf16.gmra.mrb[0].mxu0 %v109
  %v205 = vpop.f32.mrb[0].mxu0
  %v206 = vadd.f32 %v84, %v205
  %v207 = vpop.f32.mrb[0].mxu0
  %v208 = vpop.f32.mrb[0].mxu0
  %v209 = vadd.f32 %v84, %v208
  %v210 = vpop.f32.mrb[0].mxu0
  %211 = vmatprep.mubr.bf16.mxu0 0
  %212 = vmatmul.mubr.bf16.gmra.mrb[0].mxu0 %v112
  %v213 = vpop.f32.mrb[0].mxu0
  %v214 = vadd.f32 %v84, %v213
  %v215 = vpop.f32.mrb[0].mxu0
  %v216 = vpop.f32.mrb[0].mxu0
  %v217 = vadd.f32 %v84, %v216
  %v218 = vpop.f32.mrb[0].mxu0
  %219 = vmatprep.mubr.bf16.mxu0 0
  %220 = vmatmul.mubr.bf16.gmra.mrb[0].mxu0 %v115
  %v221 = vpop.f32.mrb[0].mxu0
  %v222 = vadd.f32 %v84, %v221
  %v223 = vpop.f32.mrb[0].mxu0
  %v224 = vpop.f32.mrb[0].mxu0
  %v225 = vadd.f32 %v84, %v224
  %v226 = vpop.f32.mrb[0].mxu0
  %227 = vmatprep.mubr.bf16.mxu0 0
  %228 = vmatmul.mubr.bf16.gmra.mrb[0].mxu0 %v118
  %v229 = vpop.f32.mrb[0].mxu0
  %v230 = vadd.f32 %v84, %v229
  %v231 = vpop.f32.mrb[0].mxu0
  %v232 = vpop.f32.mrb[0].mxu0
  %v233 = vadd.f32 %v84, %v232
  %v234 = vpop.f32.mrb[0].mxu0
  %235 = vmatprep.mubr.bf16.mxu0 0
  %236 = vmatmul.mubr.bf16.gmra.mrb[0].mxu0 %v121
  %v237 = vpop.f32.mrb[0].mxu0
  %v238 = vadd.f32 %v84, %v237
  %v239 = vpop.f32.mrb[0].mxu0
  %v240 = vpop.f32.mrb[0].mxu0
  %v241 = vadd.f32 %v84, %v240
  %v242 = vpop.f32.mrb[0].mxu0
  %243 = vmatprep.mubr.bf16.mxu0 0
  %244 = vmatmul.mubr.bf16.gmra.mrb[0].mxu0 %v124
  %v245 = vpop.f32.mrb[0].mxu0
  %v246 = vadd.f32 %v84, %v245
  %v247 = vpop.f32.mrb[0].mxu0
  %v248 = vpop.f32.mrb[0].mxu0
  %v249 = vadd.f32 %v84, %v248
  %v250 = vpop.f32.mrb[0].mxu0
  %251 = vmatprep.mubr.bf16.mxu0 0
  %252 = vmatmul.mubr.bf16.gmra.mrb[0].mxu0 %v127
  %v253 = vpop.f32.mrb[0].mxu0
  %v254 = vadd.f32 %v84, %v253
  %v255 = vpop.f32.mrb[0].mxu0
  %v256 = vpop.f32.mrb[0].mxu0
  %v257 = vadd.f32 %v84, %v256
  %v258 = vpop.f32.mrb[0].mxu0
  %259 = vmatprep.mubr.bf16.mxu0 0
  %260 = vmatmul.mubr.bf16.gmra.mrb[0].mxu0 %v130
  %v261 = vpop.f32.mrb[0].mxu0
  %v262 = vadd.f32 %v84, %v261
  %v263 = vpop.f32.mrb[0].mxu0
  %v264 = vpop.f32.mrb[0].mxu0
  %v265 = vadd.f32 %v84, %v264
  %v266 = vpop.f32.mrb[0].mxu0
  %267 = vmatprep.mubr.bf16.mxu0 0
  %268 = vmatmul.mubr.bf16.gmra.mrb[0].mxu0 %v133
  %v269 = vpop.f32.mrb[0].mxu0
  %v270 = vadd.f32 %v84, %v269
  %v271 = vpop.f32.mrb[0].mxu0
  %v272 = vpop.f32.mrb[0].mxu0
  %v273 = vadd.f32 %v84, %v272
  %v274 = vpop.f32.mrb[0].mxu0
  %275 = vmatprep.mubr.bf16.mxu0 0
  %276 = vmatmul.mubr.bf16.gmra.mrb[0].mxu0 %v136
  %v277 = vpop.f32.mrb[0].mxu0
  %v278 = vadd.f32 %v84, %v277
  %v279 = vpop.f32.mrb[0].mxu0
  %v280 = vpop.f32.mrb[0].mxu0
  %v281 = vadd.f32 %v84, %v280
  %v282 = vpop.f32.mrb[0].mxu0
  %283 = vmatprep.mubr.bf16.mxu0 0
  %284 = vmatmul.mubr.bf16.gmra.mrb[0].mxu0 %v139
  %v285 = vpop.f32.mrb[0].mxu0
  %v286 = vadd.f32 %v84, %v285
  %v287 = vpop.f32.mrb[0].mxu0
  %v288 = vpop.f32.mrb[0].mxu0
  %v289 = vadd.f32 %v84, %v288
  %v290 = vpop.f32.mrb[0].mxu0
  %291 = vmatprep.mubr.bf16.mxu0 0
  %292 = vmatmul.mubr.bf16.gmra.mrb[0].mxu0 %v142
  %v293 = vpop.f32.mrb[0].mxu0
  %v294 = vadd.f32 %v84, %v293
  %v295 = vpop.f32.mrb[0].mxu0
  %v296 = vpop.f32.mrb[0].mxu0
  %v297 = vadd.f32 %v84, %v296
  %v298 = vpop.f32.mrb[0].mxu0
  %299 = vmatprep.mubr.bf16.mxu0 0
  %300 = vmatmul.mubr.bf16.gmra.mrb[0].mxu0 %v145
  %v301 = vpop.f32.mrb[0].mxu0
  %v302 = vadd.f32 %v84, %v301
  %v303 = vpop.f32.mrb[0].mxu0
  %v304 = vpop.f32.mrb[0].mxu0
  %v305 = vadd.f32 %v84, %v304
  %v306 = vpop.f32.mrb[0].mxu0
  %307 = vdwg.mxu0
  %v308 = vmax.f32 %v182, 0.0
  %v309 = vmax.f32 %v185, 0.0
  %v310 = vmax.f32 %v190, 0.0
  %v311 = vmax.f32 %v193, 0.0
  %v312 = vmax.f32 %v198, 0.0
  %v313 = vmax.f32 %v201, 0.0
  %v314 = vmax.f32 %v206, 0.0
  %v315 = vmax.f32 %v209, 0.0
  %v316 = vmax.f32 %v214, 0.0
  %v317 = vmax.f32 %v217, 0.0
  %v318 = vmax.f32 %v222, 0.0
  %v319 = vmax.f32 %v225, 0.0
  %v320 = vmax.f32 %v230, 0.0
  %v321 = vmax.f32 %v233, 0.0
  %v322 = vmax.f32 %v238, 0.0
  %v323 = vmax.f32 %v241, 0.0
  %v324 = vmax.f32 %v246, 0.0
  %v325 = vmax.f32 %v249, 0.0
  %v326 = vmax.f32 %v254, 0.0
  %v327 = vmax.f32 %v257, 0.0
  %v328 = vmax.f32 %v262, 0.0
  %v329 = vmax.f32 %v265, 0.0
  %v330 = vmax.f32 %v270, 0.0
  %v331 = vmax.f32 %v273, 0.0
  %v332 = vmax.f32 %v278, 0.0
  %v333 = vmax.f32 %v281, 0.0
  %v334 = vmax.f32 %v286, 0.0
  %v335 = vmax.f32 %v289, 0.0
  %v336 = vmax.f32 %v294, 0.0
  %v337 = vmax.f32 %v297, 0.0
  %v338 = vmax.f32 %v302, 0.0
  %v339 = vmax.f32 %v305, 0.0
  %v340 = vpack.c.bf16 %v309, %v308
  %v341 = vpack.c.bf16 %v311, %v310
  %v342 = vpack.c.bf16 %v313, %v312
  %v343 = vpack.c.bf16 %v315, %v314
  %v344 = vpack.c.bf16 %v317, %v316
  %v345 = vpack.c.bf16 %v319, %v318
  %v346 = vpack.c.bf16 %v321, %v320
  %v347 = vpack.c.bf16 %v323, %v322
  %v348 = vpack.c.bf16 %v325, %v324
  %v349 = vpack.c.bf16 %v327, %v326
  %v350 = vpack.c.bf16 %v329, %v328
  %v351 = vpack.c.bf16 %v331, %v330
  %v352 = vpack.c.bf16 %v333, %v332
  %v353 = vpack.c.bf16 %v335, %v334
  %v354 = vpack.c.bf16 %v337, %v336
  %v355 = vpack.c.bf16 %v339, %v338
  %v356 = vld [vmem:[%s3] sm:$0xf]
  %v357 = vld [vmem:[%s3 + $0x4] sm:$0xf]
  %v358 = vld [vmem:[%s3 + $0x8] sm:$0xf]
  %v359 = vld [vmem:[%s3 + $0xc] sm:$0xf]
  %v360 = vld [vmem:[%s3 + $0x10] sm:$0xf]
  %v361 = vld [vmem:[%s3 + $0x14] sm:$0xf]
  %v362 = vld [vmem:[%s3 + $0x18] sm:$0xf]
  %v363 = vld [vmem:[%s3 + $0x1c] sm:$0xf]
  %v364 = vld [vmem:[%s3 + $0x20] sm:$0xf]
  %v365 = vld [vmem:[%s3 + $0x24] sm:$0xf]
  %v366 = vld [vmem:[%s3 + $0x28] sm:$0xf]
  %v367 = vld [vmem:[%s3 + $0x2c] sm:$0xf]
  %v368 = vld [vmem:[%s3 + $0x30] sm:$0xf]
  %v369 = vld [vmem:[%s3 + $0x34] sm:$0xf]
  %v370 = vld [vmem:[%s3 + $0x38] sm:$0xf]
  %v371 = vld [vmem:[%s3 + $0x3c] sm:$0xf]
  %v372 = vld [vmem:[%s4] sm:$0x1]
  %v374 = vlaneseq
  %v375 = vshrl.u32 %v374, 7
  %v376 = vsub.s32 0, %v375
  %v377 = vrot.slane %v372, %v376
  %v395 = vunpack.c.l.b16 %v356
  %v396 = vunpack.c.l.b16 %v357
  %v397 = vunpack.c.l.b16 %v358
  %v398 = vunpack.c.l.b16 %v359
  %v399 = vunpack.c.l.b16 %v360
  %v400 = vunpack.c.l.b16 %v361
  %v401 = vunpack.c.l.b16 %v362
  %v402 = vunpack.c.l.b16 %v363
  %v403 = vunpack.c.l.b16 %v364
  %v404 = vunpack.c.l.b16 %v365
  %v405 = vunpack.c.l.b16 %v366
  %v406 = vunpack.c.l.b16 %v367
  %v407 = vunpack.c.l.b16 %v368
  %v408 = vunpack.c.l.b16 %v369
  %v409 = vunpack.c.l.b16 %v370
  %v410 = vunpack.c.l.b16 %v371
  %v411 = vpack.c.b16 %v396, %v395
  %v412 = vpack.c.b16 %v398, %v397
  %v413 = vpack.c.b16 %v400, %v399
  %v414 = vpack.c.b16 %v402, %v401
  %v415 = vpack.c.b16 %v404, %v403
  %v416 = vpack.c.b16 %v406, %v405
  %v417 = vpack.c.b16 %v408, %v407
  %v418 = vpack.c.b16 %v410, %v409
  %427 = vmatprep.subr.bf16.mxu0 0
  %428 = vmatpush1.bf16.msra.mxu0 %v411
  %429 = vmatprep.subr.bf16.mxu0 0
  %430 = vmatpush1.bf16.msra.mxu0 %v412
  %431 = vmatprep.subr.bf16.mxu0 0
  %432 = vmatpush1.bf16.msra.mxu0 %v413
  %433 = vmatprep.subr.bf16.mxu0 0
  %434 = vmatpush1.bf16.msra.mxu0 %v414
  %435 = vmatprep.subr.bf16.mxu0 0
  %436 = vmatpush1.bf16.msra.mxu0 %v415
  %437 = vmatprep.subr.bf16.mxu0 0
  %438 = vmatpush1.bf16.msra.mxu0 %v416
  %439 = vmatprep.subr.bf16.mxu0 0
  %440 = vmatpush1.bf16.msra.mxu0 %v417
  %441 = vmatprep.subr.bf16.mxu0 0
  %442 = vmatpush1.bf16.msra.mxu0 %v418
  %443 = vmatprep.subr.bf16.mxu0 0
  %444 = vmatpush1.bf16.msra.mxu0 0
  %445 = vmatprep.subr.bf16.mxu0 0
  %446 = vmatpush1.bf16.msra.mxu0 0
  %447 = vmatprep.subr.bf16.mxu0 0
  %448 = vmatpush1.bf16.msra.mxu0 0
  %449 = vmatprep.subr.bf16.mxu0 0
  %450 = vmatpush1.bf16.msra.mxu0 0
  %451 = vmatprep.subr.bf16.mxu0 0
  %452 = vmatpush1.bf16.msra.mxu0 0
  %453 = vmatprep.subr.bf16.mxu0 0
  %454 = vmatpush1.bf16.msra.mxu0 0
  %455 = vmatprep.subr.bf16.mxu0 0
  %456 = vmatpush1.bf16.msra.mxu0 0
  %457 = vmatprep.subr.bf16.mxu0 0
  %458 = vmatpush1.bf16.msra.mxu0 0
  %459 = vmatprep.mubr.bf16.mxu0 0
  %460 = vmatmul.mubr.bf16.gmra.mrb[0].mxu0 %v340
  %v461 = vpop.f32.mrb[0].mxu0
  %v462 = vadd.f32 %v377, %v461
  %v463 = vpop.f32.mrb[0].mxu0
  %v464 = vpop.f32.mrb[0].mxu0
  %v465 = vadd.f32 %v377, %v464
  %v466 = vpop.f32.mrb[0].mxu0
  %467 = vmatprep.mubr.bf16.mxu0 0
  %468 = vmatmul.mubr.bf16.gmra.mrb[0].mxu0 %v341
  %v469 = vpop.f32.mrb[0].mxu0
  %v470 = vadd.f32 %v377, %v469
  %v471 = vpop.f32.mrb[0].mxu0
  %v472 = vpop.f32.mrb[0].mxu0
  %v473 = vadd.f32 %v377, %v472
  %v474 = vpop.f32.mrb[0].mxu0
  %475 = vmatprep.mubr.bf16.mxu0 0
  %476 = vmatmul.mubr.bf16.gmra.mrb[0].mxu0 %v342
  %v477 = vpop.f32.mrb[0].mxu0
  %v478 = vadd.f32 %v377, %v477
  %v479 = vpop.f32.mrb[0].mxu0
  %v480 = vpop.f32.mrb[0].mxu0
  %v481 = vadd.f32 %v377, %v480
  %v482 = vpop.f32.mrb[0].mxu0
  %483 = vmatprep.mubr.bf16.mxu0 0
  %484 = vmatmul.mubr.bf16.gmra.mrb[0].mxu0 %v343
  %v485 = vpop.f32.mrb[0].mxu0
  %v486 = vadd.f32 %v377, %v485
  %v487 = vpop.f32.mrb[0].mxu0
  %v488 = vpop.f32.mrb[0].mxu0
  %v489 = vadd.f32 %v377, %v488
  %v490 = vpop.f32.mrb[0].mxu0
  %491 = vmatprep.mubr.bf16.mxu0 0
  %492 = vmatmul.mubr.bf16.gmra.mrb[0].mxu0 %v344
  %v493 = vpop.f32.mrb[0].mxu0
  %v494 = vadd.f32 %v377, %v493
  %v495 = vpop.f32.mrb[0].mxu0
  %v496 = vpop.f32.mrb[0].mxu0
  %v497 = vadd.f32 %v377, %v496
  %v498 = vpop.f32.mrb[0].mxu0
  %499 = vmatprep.mubr.bf16.mxu0 0
  %500 = vmatmul.mubr.bf16.gmra.mrb[0].mxu0 %v345
  %v501 = vpop.f32.mrb[0].mxu0
  %v502 = vadd.f32 %v377, %v501
  %v503 = vpop.f32.mrb[0].mxu0
  %v504 = vpop.f32.mrb[0].mxu0
  %v505 = vadd.f32 %v377, %v504
  %v506 = vpop.f32.mrb[0].mxu0
  %507 = vmatprep.mubr.bf16.mxu0 0
  %508 = vmatmul.mubr.bf16.gmra.mrb[0].mxu0 %v346
  %v509 = vpop.f32.mrb[0].mxu0
  %v510 = vadd.f32 %v377, %v509
  %v511 = vpop.f32.mrb[0].mxu0
  %v512 = vpop.f32.mrb[0].mxu0
  %v513 = vadd.f32 %v377, %v512
  %v514 = vpop.f32.mrb[0].mxu0
  %515 = vmatprep.mubr.bf16.mxu0 0
  %516 = vmatmul.mubr.bf16.gmra.mrb[0].mxu0 %v347
  %v517 = vpop.f32.mrb[0].mxu0
  %v518 = vadd.f32 %v377, %v517
  %v519 = vpop.f32.mrb[0].mxu0
  %v520 = vpop.f32.mrb[0].mxu0
  %v521 = vadd.f32 %v377, %v520
  %v522 = vpop.f32.mrb[0].mxu0
  %523 = vmatprep.mubr.bf16.mxu0 0
  %524 = vmatmul.mubr.bf16.gmra.mrb[0].mxu0 %v348
  %v525 = vpop.f32.mrb[0].mxu0
  %v526 = vadd.f32 %v377, %v525
  %v527 = vpop.f32.mrb[0].mxu0
  %v528 = vpop.f32.mrb[0].mxu0
  %v529 = vadd.f32 %v377, %v528
  %v530 = vpop.f32.mrb[0].mxu0
  %531 = vmatprep.mubr.bf16.mxu0 0
  %532 = vmatmul.mubr.bf16.gmra.mrb[0].mxu0 %v349
  %v533 = vpop.f32.mrb[0].mxu0
  %v534 = vadd.f32 %v377, %v533
  %v535 = vpop.f32.mrb[0].mxu0
  %v536 = vpop.f32.mrb[0].mxu0
  %v537 = vadd.f32 %v377, %v536
  %v538 = vpop.f32.mrb[0].mxu0
  %539 = vmatprep.mubr.bf16.mxu0 0
  %540 = vmatmul.mubr.bf16.gmra.mrb[0].mxu0 %v350
  %v541 = vpop.f32.mrb[0].mxu0
  %v542 = vadd.f32 %v377, %v541
  %v543 = vpop.f32.mrb[0].mxu0
  %v544 = vpop.f32.mrb[0].mxu0
  %v545 = vadd.f32 %v377, %v544
  %v546 = vpop.f32.mrb[0].mxu0
  %547 = vmatprep.mubr.bf16.mxu0 0
  %548 = vmatmul.mubr.bf16.gmra.mrb[0].mxu0 %v351
  %v549 = vpop.f32.mrb[0].mxu0
  %v550 = vadd.f32 %v377, %v549
  %v551 = vpop.f32.mrb[0].mxu0
  %v552 = vpop.f32.mrb[0].mxu0
  %v553 = vadd.f32 %v377, %v552
  %v554 = vpop.f32.mrb[0].mxu0
  %555 = vmatprep.mubr.bf16.mxu0 0
  %556 = vmatmul.mubr.bf16.gmra.mrb[0].mxu0 %v352
  %v557 = vpop.f32.mrb[0].mxu0
  %v558 = vadd.f32 %v377, %v557
  %v559 = vpop.f32.mrb[0].mxu0
  %v560 = vpop.f32.mrb[0].mxu0
  %v561 = vadd.f32 %v377, %v560
  %v562 = vpop.f32.mrb[0].mxu0
  %563 = vmatprep.mubr.bf16.mxu0 0
  %564 = vmatmul.mubr.bf16.gmra.mrb[0].mxu0 %v353
  %v565 = vpop.f32.mrb[0].mxu0
  %v566 = vadd.f32 %v377, %v565
  %v567 = vpop.f32.mrb[0].mxu0
  %v568 = vpop.f32.mrb[0].mxu0
  %v569 = vadd.f32 %v377, %v568
  %v570 = vpop.f32.mrb[0].mxu0
  %571 = vmatprep.mubr.bf16.mxu0 0
  %572 = vmatmul.mubr.bf16.gmra.mrb[0].mxu0 %v354
  %v573 = vpop.f32.mrb[0].mxu0
  %v574 = vadd.f32 %v377, %v573
  %v575 = vpop.f32.mrb[0].mxu0
  %v576 = vpop.f32.mrb[0].mxu0
  %v577 = vadd.f32 %v377, %v576
  %v578 = vpop.f32.mrb[0].mxu0
  %579 = vmatprep.mubr.bf16.mxu0 0
  %580 = vmatmul.mubr.bf16.gmra.mrb[0].mxu0 %v355
  %v581 = vpop.f32.mrb[0].mxu0
  %v582 = vadd.f32 %v377, %v581
  %v583 = vpop.f32.mrb[0].mxu0
  %v584 = vpop.f32.mrb[0].mxu0
  %v585 = vadd.f32 %v377, %v584
  %v586 = vpop.f32.mrb[0].mxu0
  %587 = vdwg.mxu0
  %v588 = vmax.f32 %v462, 0.0
  %v589 = vmax.f32 %v465, 0.0
  %v590 = vmax.f32 %v470, 0.0
  %v591 = vmax.f32 %v473, 0.0
  %v592 = vmax.f32 %v478, 0.0
  %v593 = vmax.f32 %v481, 0.0
  %v594 = vmax.f32 %v486, 0.0
  %v595 = vmax.f32 %v489, 0.0
  %v596 = vmax.f32 %v494, 0.0
  %v597 = vmax.f32 %v497, 0.0
  %v598 = vmax.f32 %v502, 0.0
  %v599 = vmax.f32 %v505, 0.0
  %v600 = vmax.f32 %v510, 0.0
  %v601 = vmax.f32 %v513, 0.0
  %v602 = vmax.f32 %v518, 0.0
  %v603 = vmax.f32 %v521, 0.0
  %v604 = vmax.f32 %v526, 0.0
  %v605 = vmax.f32 %v529, 0.0
  %v606 = vmax.f32 %v534, 0.0
  %v607 = vmax.f32 %v537, 0.0
  %v608 = vmax.f32 %v542, 0.0
  %v609 = vmax.f32 %v545, 0.0
  %v610 = vmax.f32 %v550, 0.0
  %v611 = vmax.f32 %v553, 0.0
  %v612 = vmax.f32 %v558, 0.0
  %v613 = vmax.f32 %v561, 0.0
  %v614 = vmax.f32 %v566, 0.0
  %v615 = vmax.f32 %v569, 0.0
  %v616 = vmax.f32 %v574, 0.0
  %v617 = vmax.f32 %v577, 0.0
  %v618 = vmax.f32 %v582, 0.0
  %v619 = vmax.f32 %v585, 0.0
  %v620 = vpack.c.bf16 %v589, %v588
  %v621 = vpack.c.bf16 %v591, %v590
  %v622 = vpack.c.bf16 %v593, %v592
  %v623 = vpack.c.bf16 %v595, %v594
  %v624 = vpack.c.bf16 %v597, %v596
  %v625 = vpack.c.bf16 %v599, %v598
  %v626 = vpack.c.bf16 %v601, %v600
  %v627 = vpack.c.bf16 %v603, %v602
  %v628 = vpack.c.bf16 %v605, %v604
  %v629 = vpack.c.bf16 %v607, %v606
  %v630 = vpack.c.bf16 %v609, %v608
  %v631 = vpack.c.bf16 %v611, %v610
  %v632 = vpack.c.bf16 %v613, %v612
  %v633 = vpack.c.bf16 %v615, %v614
  %v634 = vpack.c.bf16 %v617, %v616
  %v635 = vpack.c.bf16 %v619, %v618
  %v636 = vld [vmem:[%s5] sm:$0xff]
  %v637 = vld [vmem:[%s5 + $0x8] sm:$0xff]
  %v638 = vld [vmem:[%s5 + $0x10] sm:$0xff]
  %v639 = vld [vmem:[%s5 + $0x18] sm:$0xff]
  %v640 = vld [vmem:[%s5 + $0x20] sm:$0xff]
  %v641 = vld [vmem:[%s5 + $0x28] sm:$0xff]
  %v642 = vld [vmem:[%s5 + $0x30] sm:$0xff]
  %v643 = vld [vmem:[%s5 + $0x38] sm:$0xff]
  %v644 = vld [vmem:[%s5 + $0x40] sm:$0xff]
  %v645 = vld [vmem:[%s5 + $0x48] sm:$0xff]
  %v646 = vld [vmem:[%s5 + $0x50] sm:$0xff]
  %v647 = vld [vmem:[%s5 + $0x58] sm:$0xff]
  %v648 = vld [vmem:[%s5 + $0x60] sm:$0xff]
  %v649 = vld [vmem:[%s5 + $0x68] sm:$0xff]
  %v650 = vld [vmem:[%s5 + $0x70] sm:$0xff]
  %v651 = vld [vmem:[%s5 + $0x78] sm:$0xff]
  %v652 = vld [vmem:[%s6] sm:$0x3]
  %v654 = vlaneseq
  %v655 = vshrl.u32 %v654, 7
  %v656 = vsub.s32 0, %v655
  %v657 = vrot.slane %v652, %v656
  %v658 = vlaneseq
  %v659 = vshrl.u32 %v658, 7
  %v660 = vsub.s32 1, %v659
  %v661 = vrot.slane %v652, %v660
  %v680 = vunpack.c.l.b16 %v636
  %v681 = vunpack.c.h.b16 %v636
  %v682 = vunpack.c.l.b16 %v637
  %v683 = vunpack.c.h.b16 %v637
  %v684 = vunpack.c.l.b16 %v638
  %v685 = vunpack.c.h.b16 %v638
  %v686 = vunpack.c.l.b16 %v639
  %v687 = vunpack.c.h.b16 %v639
  %v688 = vunpack.c.l.b16 %v640
  %v689 = vunpack.c.h.b16 %v640
  %v690 = vunpack.c.l.b16 %v641
  %v691 = vunpack.c.h.b16 %v641
  %v692 = vunpack.c.l.b16 %v642
  %v693 = vunpack.c.h.b16 %v642
  %v694 = vunpack.c.l.b16 %v643
  %v695 = vunpack.c.h.b16 %v643
  %v696 = vunpack.c.l.b16 %v644
  %v697 = vunpack.c.h.b16 %v644
  %v698 = vunpack.c.l.b16 %v645
  %v699 = vunpack.c.h.b16 %v645
  %v700 = vunpack.c.l.b16 %v646
  %v701 = vunpack.c.h.b16 %v646
  %v702 = vunpack.c.l.b16 %v647
  %v703 = vunpack.c.h.b16 %v647
  %v704 = vunpack.c.l.b16 %v648
  %v705 = vunpack.c.h.b16 %v648
  %v706 = vunpack.c.l.b16 %v649
  %v707 = vunpack.c.h.b16 %v649
  %v708 = vunpack.c.l.b16 %v650
  %v709 = vunpack.c.h.b16 %v650
  %v710 = vunpack.c.l.b16 %v651
  %v711 = vunpack.c.h.b16 %v651
  %v712 = vpack.c.b16 %v682, %v680
  %v713 = vpack.c.b16 %v683, %v681
  %v714 = vpack.c.b16 %v686, %v684
  %v715 = vpack.c.b16 %v687, %v685
  %v716 = vpack.c.b16 %v690, %v688
  %v717 = vpack.c.b16 %v691, %v689
  %v718 = vpack.c.b16 %v694, %v692
  %v719 = vpack.c.b16 %v695, %v693
  %v720 = vpack.c.b16 %v698, %v696
  %v721 = vpack.c.b16 %v699, %v697
  %v722 = vpack.c.b16 %v702, %v700
  %v723 = vpack.c.b16 %v703, %v701
  %v724 = vpack.c.b16 %v706, %v704
  %v725 = vpack.c.b16 %v707, %v705
  %v726 = vpack.c.b16 %v710, %v708
  %v727 = vpack.c.b16 %v711, %v709
  %744 = vmatprep.subr.bf16.mxu0 %v713
  %745 = vmatpush1.bf16.msra.mxu0 %v712
  %746 = vmatprep.subr.bf16.mxu0 %v715
  %747 = vmatpush1.bf16.msra.mxu0 %v714
  %748 = vmatprep.subr.bf16.mxu0 %v717
  %749 = vmatpush1.bf16.msra.mxu0 %v716
  %750 = vmatprep.subr.bf16.mxu0 %v719
  %751 = vmatpush1.bf16.msra.mxu0 %v718
  %752 = vmatprep.subr.bf16.mxu0 %v721
  %753 = vmatpush1.bf16.msra.mxu0 %v720
  %754 = vmatprep.subr.bf16.mxu0 %v723
  %755 = vmatpush1.bf16.msra.mxu0 %v722
  %756 = vmatprep.subr.bf16.mxu0 %v725
  %757 = vmatpush1.bf16.msra.mxu0 %v724
  %758 = vmatprep.subr.bf16.mxu0 %v727
  %759 = vmatpush1.bf16.msra.mxu0 %v726
  %760 = vmatprep.subr.bf16.mxu0 0
  %761 = vmatpush1.bf16.msra.mxu0 0
  %762 = vmatprep.subr.bf16.mxu0 0
  %763 = vmatpush1.bf16.msra.mxu0 0
  %764 = vmatprep.subr.bf16.mxu0 0
  %765 = vmatpush1.bf16.msra.mxu0 0
  %766 = vmatprep.subr.bf16.mxu0 0
  %767 = vmatpush1.bf16.msra.mxu0 0
  %768 = vmatprep.subr.bf16.mxu0 0
  %769 = vmatpush1.bf16.msra.mxu0 0
  %770 = vmatprep.subr.bf16.mxu0 0
  %771 = vmatpush1.bf16.msra.mxu0 0
  %772 = vmatprep.subr.bf16.mxu0 0
  %773 = vmatpush1.bf16.msra.mxu0 0
  %774 = vmatprep.subr.bf16.mxu0 0
  %775 = vmatpush1.bf16.msra.mxu0 0
  %776 = vmatprep.mubr.bf16.mxu0 0
  %777 = vmatmul.mubr.bf16.gmra.mrb[0].mxu0 %v620
  %v778 = vpop.f32.mrb[0].mxu0
  %v779 = vadd.f32 %v657, %v778
  %v780 = vpop.f32.mrb[0].mxu0
  %v781 = vadd.f32 %v661, %v780
  %v782 = vpop.f32.mrb[0].mxu0
  %v783 = vadd.f32 %v657, %v782
  %v784 = vpop.f32.mrb[0].mxu0
  %v785 = vadd.f32 %v661, %v784
  %786 = vmatprep.mubr.bf16.mxu0 0
  %787 = vmatmul.mubr.bf16.gmra.mrb[0].mxu0 %v621
  %v788 = vpop.f32.mrb[0].mxu0
  %v789 = vadd.f32 %v657, %v788
  %v790 = vpop.f32.mrb[0].mxu0
  %v791 = vadd.f32 %v661, %v790
  %v792 = vpop.f32.mrb[0].mxu0
  %v793 = vadd.f32 %v657, %v792
  %v794 = vpop.f32.mrb[0].mxu0
  %v795 = vadd.f32 %v661, %v794
  %796 = vmatprep.mubr.bf16.mxu0 0
  %797 = vmatmul.mubr.bf16.gmra.mrb[0].mxu0 %v622
  %v798 = vpop.f32.mrb[0].mxu0
  %v799 = vadd.f32 %v657, %v798
  %v800 = vpop.f32.mrb[0].mxu0
  %v801 = vadd.f32 %v661, %v800
  %v802 = vpop.f32.mrb[0].mxu0
  %v803 = vadd.f32 %v657, %v802
  %v804 = vpop.f32.mrb[0].mxu0
  %v805 = vadd.f32 %v661, %v804
  %806 = vmatprep.mubr.bf16.mxu0 0
  %807 = vmatmul.mubr.bf16.gmra.mrb[0].mxu0 %v623
  %v808 = vpop.f32.mrb[0].mxu0
  %v809 = vadd.f32 %v657, %v808
  %v810 = vpop.f32.mrb[0].mxu0
  %v811 = vadd.f32 %v661, %v810
  %v812 = vpop.f32.mrb[0].mxu0
  %v813 = vadd.f32 %v657, %v812
  %v814 = vpop.f32.mrb[0].mxu0
  %v815 = vadd.f32 %v661, %v814
  %816 = vmatprep.mubr.bf16.mxu0 0
  %817 = vmatmul.mubr.bf16.gmra.mrb[0].mxu0 %v624
  %v818 = vpop.f32.mrb[0].mxu0
  %v819 = vadd.f32 %v657, %v818
  %v820 = vpop.f32.mrb[0].mxu0
  %v821 = vadd.f32 %v661, %v820
  %v822 = vpop.f32.mrb[0].mxu0
  %v823 = vadd.f32 %v657, %v822
  %v824 = vpop.f32.mrb[0].mxu0
  %v825 = vadd.f32 %v661, %v824
  %826 = vmatprep.mubr.bf16.mxu0 0
  %827 = vmatmul.mubr.bf16.gmra.mrb[0].mxu0 %v625
  %v828 = vpop.f32.mrb[0].mxu0
  %v829 = vadd.f32 %v657, %v828
  %v830 = vpop.f32.mrb[0].mxu0
  %v831 = vadd.f32 %v661, %v830
  %v832 = vpop.f32.mrb[0].mxu0
  %v833 = vadd.f32 %v657, %v832
  %v834 = vpop.f32.mrb[0].mxu0
  %v835 = vadd.f32 %v661, %v834
  %836 = vmatprep.mubr.bf16.mxu0 0
  %837 = vmatmul.mubr.bf16.gmra.mrb[0].mxu0 %v626
  %v838 = vpop.f32.mrb[0].mxu0
  %v839 = vadd.f32 %v657, %v838
  %v840 = vpop.f32.mrb[0].mxu0
  %v841 = vadd.f32 %v661, %v840
  %v842 = vpop.f32.mrb[0].mxu0
  %v843 = vadd.f32 %v657, %v842
  %v844 = vpop.f32.mrb[0].mxu0
  %v845 = vadd.f32 %v661, %v844
  %846 = vmatprep.mubr.bf16.mxu0 0
  %847 = vmatmul.mubr.bf16.gmra.mrb[0].mxu0 %v627
  %v848 = vpop.f32.mrb[0].mxu0
  %v849 = vadd.f32 %v657, %v848
  %v850 = vpop.f32.mrb[0].mxu0
  %v851 = vadd.f32 %v661, %v850
  %v852 = vpop.f32.mrb[0].mxu0
  %v853 = vadd.f32 %v657, %v852
  %v854 = vpop.f32.mrb[0].mxu0
  %v855 = vadd.f32 %v661, %v854
  %856 = vmatprep.mubr.bf16.mxu0 0
  %857 = vmatmul.mubr.bf16.gmra.mrb[0].mxu0 %v628
  %v858 = vpop.f32.mrb[0].mxu0
  %v859 = vadd.f32 %v657, %v858
  %v860 = vpop.f32.mrb[0].mxu0
  %v861 = vadd.f32 %v661, %v860
  %v862 = vpop.f32.mrb[0].mxu0
  %v863 = vadd.f32 %v657, %v862
  %v864 = vpop.f32.mrb[0].mxu0
  %v865 = vadd.f32 %v661, %v864
  %866 = vmatprep.mubr.bf16.mxu0 0
  %867 = vmatmul.mubr.bf16.gmra.mrb[0].mxu0 %v629
  %v868 = vpop.f32.mrb[0].mxu0
  %v869 = vadd.f32 %v657, %v868
  %v870 = vpop.f32.mrb[0].mxu0
  %v871 = vadd.f32 %v661, %v870
  %v872 = vpop.f32.mrb[0].mxu0
  %v873 = vadd.f32 %v657, %v872
  %v874 = vpop.f32.mrb[0].mxu0
  %v875 = vadd.f32 %v661, %v874
  %876 = vmatprep.mubr.bf16.mxu0 0
  %877 = vmatmul.mubr.bf16.gmra.mrb[0].mxu0 %v630
  %v878 = vpop.f32.mrb[0].mxu0
  %v879 = vadd.f32 %v657, %v878
  %v880 = vpop.f32.mrb[0].mxu0
  %v881 = vadd.f32 %v661, %v880
  %v882 = vpop.f32.mrb[0].mxu0
  %v883 = vadd.f32 %v657, %v882
  %v884 = vpop.f32.mrb[0].mxu0
  %v885 = vadd.f32 %v661, %v884
  %886 = vmatprep.mubr.bf16.mxu0 0
  %887 = vmatmul.mubr.bf16.gmra.mrb[0].mxu0 %v631
  %v888 = vpop.f32.mrb[0].mxu0
  %v889 = vadd.f32 %v657, %v888
  %v890 = vpop.f32.mrb[0].mxu0
  %v891 = vadd.f32 %v661, %v890
  %v892 = vpop.f32.mrb[0].mxu0
  %v893 = vadd.f32 %v657, %v892
  %v894 = vpop.f32.mrb[0].mxu0
  %v895 = vadd.f32 %v661, %v894
  %896 = vmatprep.mubr.bf16.mxu0 0
  %897 = vmatmul.mubr.bf16.gmra.mrb[0].mxu0 %v632
  %v898 = vpop.f32.mrb[0].mxu0
  %v899 = vadd.f32 %v657, %v898
  %v900 = vpop.f32.mrb[0].mxu0
  %v901 = vadd.f32 %v661, %v900
  %v902 = vpop.f32.mrb[0].mxu0
  %v903 = vadd.f32 %v657, %v902
  %v904 = vpop.f32.mrb[0].mxu0
  %v905 = vadd.f32 %v661, %v904
  %906 = vmatprep.mubr.bf16.mxu0 0
  %907 = vmatmul.mubr.bf16.gmra.mrb[0].mxu0 %v633
  %v908 = vpop.f32.mrb[0].mxu0
  %v909 = vadd.f32 %v657, %v908
  %v910 = vpop.f32.mrb[0].mxu0
  %v911 = vadd.f32 %v661, %v910
  %v912 = vpop.f32.mrb[0].mxu0
  %v913 = vadd.f32 %v657, %v912
  %v914 = vpop.f32.mrb[0].mxu0
  %v915 = vadd.f32 %v661, %v914
  %916 = vmatprep.mubr.bf16.mxu0 0
  %917 = vmatmul.mubr.bf16.gmra.mrb[0].mxu0 %v634
  %v918 = vpop.f32.mrb[0].mxu0
  %v919 = vadd.f32 %v657, %v918
  %v920 = vpop.f32.mrb[0].mxu0
  %v921 = vadd.f32 %v661, %v920
  %v922 = vpop.f32.mrb[0].mxu0
  %v923 = vadd.f32 %v657, %v922
  %v924 = vpop.f32.mrb[0].mxu0
  %v925 = vadd.f32 %v661, %v924
  %926 = vmatprep.mubr.bf16.mxu0 0
  %927 = vmatmul.mubr.bf16.gmra.mrb[0].mxu0 %v635
  %v928 = vpop.f32.mrb[0].mxu0
  %v929 = vadd.f32 %v657, %v928
  %v930 = vpop.f32.mrb[0].mxu0
  %v931 = vadd.f32 %v661, %v930
  %v932 = vpop.f32.mrb[0].mxu0
  %v933 = vadd.f32 %v657, %v932
  %v934 = vpop.f32.mrb[0].mxu0
  %v935 = vadd.f32 %v661, %v934
  %936 = vdwg.mxu0
  %937 = vst [vmem:[%s7] sm:$0xff] %v779
  %938 = vst [vmem:[%s7 + $0x18] sm:$0xff] %v783
  %939 = vst [vmem:[%s7 + $0x30] sm:$0xff] %v789
  %940 = vst [vmem:[%s7 + $0x48] sm:$0xff] %v793
  %941 = vst [vmem:[%s7 + $0x60] sm:$0xff] %v799
  %942 = vst [vmem:[%s7 + $0x78] sm:$0xff] %v803
  %943 = vst [vmem:[%s7 + $0x90] sm:$0xff] %v809
  %944 = vst [vmem:[%s7 + $0xa8] sm:$0xff] %v813
  %945 = vst [vmem:[%s7 + $0xc0] sm:$0xff] %v819
  %946 = vst [vmem:[%s7 + $0xd8] sm:$0xff] %v823
  %947 = vst [vmem:[%s7 + $0xf0] sm:$0xff] %v829
  %948 = vst [vmem:[%s7 + $0x108] sm:$0xff] %v833
  %949 = vst [vmem:[%s7 + $0x120] sm:$0xff] %v839
  %950 = vst [vmem:[%s7 + $0x138] sm:$0xff] %v843
  %951 = vst [vmem:[%s7 + $0x150] sm:$0xff] %v849
  %952 = vst [vmem:[%s7 + $0x168] sm:$0xff] %v853
  %953 = vst [vmem:[%s7 + $0x180] sm:$0xff] %v859
  %954 = vst [vmem:[%s7 + $0x198] sm:$0xff] %v863
  %955 = vst [vmem:[%s7 + $0x1b0] sm:$0xff] %v869
  %956 = vst [vmem:[%s7 + $0x1c8] sm:$0xff] %v873
  %957 = vst [vmem:[%s7 + $0x1e0] sm:$0xff] %v879
  %958 = vst [vmem:[%s7 + $0x1f8] sm:$0xff] %v883
  %959 = vst [vmem:[%s7 + $0x210] sm:$0xff] %v889
  %960 = vst [vmem:[%s7 + $0x228] sm:$0xff] %v893
  %961 = vst [vmem:[%s7 + $0x240] sm:$0xff] %v899
  %962 = vst [vmem:[%s7 + $0x258] sm:$0xff] %v903
  %963 = vst [vmem:[%s7 + $0x270] sm:$0xff] %v909
  %964 = vst [vmem:[%s7 + $0x288] sm:$0xff] %v913
  %965 = vst [vmem:[%s7 + $0x2a0] sm:$0xff] %v919
  %966 = vst [vmem:[%s7 + $0x2b8] sm:$0xff] %v923
  %967 = vst [vmem:[%s7 + $0x2d0] sm:$0xff] %v929
  %968 = vst [vmem:[%s7 + $0x2e8] sm:$0xff] %v933
  %v969 = vmul.f32 %v781, 0.5
  %v970 = vmul.f32 %v785, 0.5
  %v971 = vmul.f32 %v791, 0.5
  %v972 = vmul.f32 %v795, 0.5
  %v973 = vmul.f32 %v801, 0.5
  %v974 = vmul.f32 %v805, 0.5
  %v975 = vmul.f32 %v811, 0.5
  %v976 = vmul.f32 %v815, 0.5
  %v977 = vmul.f32 %v821, 0.5
  %v978 = vmul.f32 %v825, 0.5
  %v979 = vmul.f32 %v831, 0.5
  %v980 = vmul.f32 %v835, 0.5
  %v981 = vmul.f32 %v841, 0.5
  %v982 = vmul.f32 %v845, 0.5
  %v983 = vmul.f32 %v851, 0.5
  %v984 = vmul.f32 %v855, 0.5
  %v985 = vmul.f32 %v861, 0.5
  %v986 = vmul.f32 %v865, 0.5
  %v987 = vmul.f32 %v871, 0.5
  %v988 = vmul.f32 %v875, 0.5
  %v989 = vmul.f32 %v881, 0.5
  %v990 = vmul.f32 %v885, 0.5
  %v991 = vmul.f32 %v891, 0.5
  %v992 = vmul.f32 %v895, 0.5
  %v993 = vmul.f32 %v901, 0.5
  %v994 = vmul.f32 %v905, 0.5
  %v995 = vmul.f32 %v911, 0.5
  %v996 = vmul.f32 %v915, 0.5
  %v997 = vmul.f32 %v921, 0.5
  %v998 = vmul.f32 %v925, 0.5
  %v999 = vmul.f32 %v931, 0.5
  %v1000 = vmul.f32 %v935, 0.5
  %v1001 = vmul.f32 %v969, 1.442695
  %v1002 = vpow.pop %v1001
  %v1003 = vmul.f32 %v970, 1.442695
  %v1004 = vpow.pop %v1003
  %v1005 = vmul.f32 %v971, 1.442695
  %v1006 = vpow.pop %v1005
  %v1007 = vmul.f32 %v972, 1.442695
  %v1008 = vpow.pop %v1007
  %v1009 = vmul.f32 %v973, 1.442695
  %v1010 = vpow.pop %v1009
  %v1011 = vmul.f32 %v974, 1.442695
  %v1012 = vpow.pop %v1011
  %v1013 = vmul.f32 %v975, 1.442695
  %v1014 = vpow.pop %v1013
  %v1015 = vmul.f32 %v976, 1.442695
  %v1016 = vpow.pop %v1015
  %v1017 = vmul.f32 %v977, 1.442695
  %v1018 = vpow.pop %v1017
  %v1019 = vmul.f32 %v978, 1.442695
  %v1020 = vpow.pop %v1019
  %v1021 = vmul.f32 %v979, 1.442695
  %v1022 = vpow.pop %v1021
  %v1023 = vmul.f32 %v980, 1.442695
  %v1024 = vpow.pop %v1023
  %v1025 = vmul.f32 %v981, 1.442695
  %v1026 = vpow.pop %v1025
  %v1027 = vmul.f32 %v982, 1.442695
  %v1028 = vpow.pop %v1027
  %v1029 = vmul.f32 %v983, 1.442695
  %v1030 = vpow.pop %v1029
  %v1031 = vmul.f32 %v984, 1.442695
  %v1032 = vpow.pop %v1031
  %v1033 = vmul.f32 %v985, 1.442695
  %v1034 = vpow.pop %v1033
  %v1035 = vmul.f32 %v986, 1.442695
  %v1036 = vpow.pop %v1035
  %v1037 = vmul.f32 %v987, 1.442695
  %v1038 = vpow.pop %v1037
  %v1039 = vmul.f32 %v988, 1.442695
  %v1040 = vpow.pop %v1039
  %v1041 = vmul.f32 %v989, 1.442695
  %v1042 = vpow.pop %v1041
  %v1043 = vmul.f32 %v990, 1.442695
  %v1044 = vpow.pop %v1043
  %v1045 = vmul.f32 %v991, 1.442695
  %v1046 = vpow.pop %v1045
  %v1047 = vmul.f32 %v992, 1.442695
  %v1048 = vpow.pop %v1047
  %v1049 = vmul.f32 %v993, 1.442695
  %v1050 = vpow.pop %v1049
  %v1051 = vmul.f32 %v994, 1.442695
  %v1052 = vpow.pop %v1051
  %v1053 = vmul.f32 %v995, 1.442695
  %v1054 = vpow.pop %v1053
  %v1055 = vmul.f32 %v996, 1.442695
  %v1056 = vpow.pop %v1055
  %v1057 = vmul.f32 %v997, 1.442695
  %v1058 = vpow.pop %v1057
  %v1059 = vmul.f32 %v998, 1.442695
  %v1060 = vpow.pop %v1059
  %v1061 = vmul.f32 %v999, 1.442695
  %v1062 = vpow.pop %v1061
  %v1063 = vmul.f32 %v1000, 1.442695
  %v1064 = vpow.pop %v1063
  %1065 = vst [vmem:[%s7 + $0x8] sm:$0xff] %v1002
  %1066 = vst [vmem:[%s7 + $0x20] sm:$0xff] %v1004
  %1067 = vst [vmem:[%s7 + $0x38] sm:$0xff] %v1006
  %1068 = vst [vmem:[%s7 + $0x50] sm:$0xff] %v1008
  %1069 = vst [vmem:[%s7 + $0x68] sm:$0xff] %v1010
  %1070 = vst [vmem:[%s7 + $0x80] sm:$0xff] %v1012
  %1071 = vst [vmem:[%s7 + $0x98] sm:$0xff] %v1014
  %1072 = vst [vmem:[%s7 + $0xb0] sm:$0xff] %v1016
  %1073 = vst [vmem:[%s7 + $0xc8] sm:$0xff] %v1018
  %1074 = vst [vmem:[%s7 + $0xe0] sm:$0xff] %v1020
  %1075 = vst [vmem:[%s7 + $0xf8] sm:$0xff] %v1022
  %1076 = vst [vmem:[%s7 + $0x110] sm:$0xff] %v1024
  %1077 = vst [vmem:[%s7 + $0x128] sm:$0xff] %v1026
  %1078 = vst [vmem:[%s7 + $0x140] sm:$0xff] %v1028
  %1079 = vst [vmem:[%s7 + $0x158] sm:$0xff] %v1030
  %1080 = vst [vmem:[%s7 + $0x170] sm:$0xff] %v1032
  %1081 = vst [vmem:[%s7 + $0x188] sm:$0xff] %v1034
  %1082 = vst [vmem:[%s7 + $0x1a0] sm:$0xff] %v1036
  %1083 = vst [vmem:[%s7 + $0x1b8] sm:$0xff] %v1038
  %1084 = vst [vmem:[%s7 + $0x1d0] sm:$0xff] %v1040
  %1085 = vst [vmem:[%s7 + $0x1e8] sm:$0xff] %v1042
  %1086 = vst [vmem:[%s7 + $0x200] sm:$0xff] %v1044
  %1087 = vst [vmem:[%s7 + $0x218] sm:$0xff] %v1046
  %1088 = vst [vmem:[%s7 + $0x230] sm:$0xff] %v1048
  %1089 = vst [vmem:[%s7 + $0x248] sm:$0xff] %v1050
  %1090 = vst [vmem:[%s7 + $0x260] sm:$0xff] %v1052
  %1091 = vst [vmem:[%s7 + $0x278] sm:$0xff] %v1054
  %1092 = vst [vmem:[%s7 + $0x290] sm:$0xff] %v1056
  %1093 = vst [vmem:[%s7 + $0x2a8] sm:$0xff] %v1058
  %1094 = vst [vmem:[%s7 + $0x2c0] sm:$0xff] %v1060
  %1095 = vst [vmem:[%s7 + $0x2d8] sm:$0xff] %v1062
  %1096 = vst [vmem:[%s7 + $0x2f0] sm:$0xff] %v1064
  %1097 = vst [vmem:[%s7 + $0x10] sm:$0xff] %v781
  %1098 = vst [vmem:[%s7 + $0x28] sm:$0xff] %v785
  %1099 = vst [vmem:[%s7 + $0x40] sm:$0xff] %v791
  %1100 = vst [vmem:[%s7 + $0x58] sm:$0xff] %v795
  %1101 = vst [vmem:[%s7 + $0x70] sm:$0xff] %v801
  %1102 = vst [vmem:[%s7 + $0x88] sm:$0xff] %v805
  %1103 = vst [vmem:[%s7 + $0xa0] sm:$0xff] %v811
  %1104 = vst [vmem:[%s7 + $0xb8] sm:$0xff] %v815
  %1105 = vst [vmem:[%s7 + $0xd0] sm:$0xff] %v821
  %1106 = vst [vmem:[%s7 + $0xe8] sm:$0xff] %v825
  %1107 = vst [vmem:[%s7 + $0x100] sm:$0xff] %v831
  %1108 = vst [vmem:[%s7 + $0x118] sm:$0xff] %v835
  %1109 = vst [vmem:[%s7 + $0x130] sm:$0xff] %v841
  %1110 = vst [vmem:[%s7 + $0x148] sm:$0xff] %v845
  %1111 = vst [vmem:[%s7 + $0x160] sm:$0xff] %v851
  %1112 = vst [vmem:[%s7 + $0x178] sm:$0xff] %v855
  %1113 = vst [vmem:[%s7 + $0x190] sm:$0xff] %v861
  %1114 = vst [vmem:[%s7 + $0x1a8] sm:$0xff] %v865
  %1115 = vst [vmem:[%s7 + $0x1c0] sm:$0xff] %v871
  %1116 = vst [vmem:[%s7 + $0x1d8] sm:$0xff] %v875
  %1117 = vst [vmem:[%s7 + $0x1f0] sm:$0xff] %v881
  %1118 = vst [vmem:[%s7 + $0x208] sm:$0xff] %v885
  %1119 = vst [vmem:[%s7 + $0x220] sm:$0xff] %v891
  %1120 = vst [vmem:[%s7 + $0x238] sm:$0xff] %v895
  %1121 = vst [vmem:[%s7 + $0x250] sm:$0xff] %v901
  %1122 = vst [vmem:[%s7 + $0x268] sm:$0xff] %v905
  %1123 = vst [vmem:[%s7 + $0x280] sm:$0xff] %v911
  %1124 = vst [vmem:[%s7 + $0x298] sm:$0xff] %v915
  %1125 = vst [vmem:[%s7 + $0x2b0] sm:$0xff] %v921
  %1126 = vst [vmem:[%s7 + $0x2c8] sm:$0xff] %v925
  %1127 = vst [vmem:[%s7 + $0x2e0] sm:$0xff] %v931
  %1128 = vst [vmem:[%s7 + $0x2f8] sm:$0xff] %v935
  // Predicated region
  $region30: #{encoder_forward.1} parent=0 // pred_check
    _
  $region31: #{encoder_forward.1} parent=0 // pred_check_branch
    %1130 = sbr.rel (0) target = $region33
  $region32: #{encoder_forward.1} parent=0 // pred_region
    _
  $region33: #{encoder_forward.1} parent=0 // pred_fallthru
    _
  // Predicated region
  $region34: #{encoder_forward.1} parent=0 // pred_check
    _
  $region35: #{encoder_forward.1} parent=0 // pred_check_branch
    %1132 = sbr.rel (0) target = $region37
  $region36: #{encoder_forward.1} parent=0 // pred_region
    _
  $region37: #{encoder_forward.1} parent=0 // pred_fallthru
    _

</llo_original>
